<compile_context>
chip_gen: v7x
topology: tpu7x:2x2x1
jax: 0.10.0
libtpu: 0.0.40
codegen_flags: <defaults>
</compile_context>

<pallas_src>
import numpy as np

import jax
import jax.numpy as jnp
from jax.experimental import pallas as pl
from jax.experimental.pallas import tpu as pltpu

EPS = 1e-5  # torch.nn.InstanceNorm2d default eps


# --------------------------------------------------------------------------- #
# Weight / constant packing (wrapper side, numpy)
# --------------------------------------------------------------------------- #
def _folded_band(w_oihw, W):
    """PyTorch conv weight (Co, Ci, 3, 3) -> K-stacked band matrix (3*L, L).

    Folded layout: super-row r holds image rows (2r, 2r+1); lane index
    l = i_sub*W*C + w*C + c.  The conv becomes
        out[r] = concat(f[r-1], f[r], f[r+1]) @ band_stacked
    where f[-1] = f[H/2] = 0.  Band block placement:
        band[d][i_sub*WC + iw*C + ci, o_sub*WC + ow*C + co] = w[co, ci, ky, kx]
        with ky = 2d + i_sub - o_sub + 1, kx = iw - ow + 1 (when in range);
    out-of-range kx (left/right zero padding) simply contributes no entry.
    """
    w = np.asarray(w_oihw, np.float32)          # (Co, Ci, 3, 3)
    C = w.shape[1]
    L = 2 * W * C
    band = np.zeros((3, L, L), np.float32)      # indexed by d + 1, d in {-1,0,1}
    for d in (-1, 0, 1):
        for i_sub in range(2):
            for o_sub in range(2):
                ky = 2 * d + i_sub - o_sub + 1
                if not 0 <= ky <= 2:
                    continue
                for kx in range(3):
                    for ow in range(W):
                        iw = ow + kx - 1
                        if not 0 <= iw < W:
                            continue                      # zero padding along W
                        r0 = i_sub * W * C + iw * C
                        c0 = o_sub * W * C + ow * C
                        band[d + 1, r0:r0 + C, c0:c0 + C] = w[:, :, ky, kx].T
    return band.reshape(3 * L, L)                # K-stacked: [d=-1 ; d=0 ; d=+1]


def _channel_projector(W, C):
    """(L, L) 0/1 matrix: proj[l, m] = 1 iff lanes l and m hold the same channel.

    rowvec @ proj broadcasts per-channel sums back across all lanes of that
    channel in a single MXU matmul (keeps instance-norm stats 128-lane dense).
    """
    L = 2 * W * C
    l = np.arange(L)
    return (l[:, None] % C == l[None, :] % C).astype(np.float32)


# --------------------------------------------------------------------------- #
# Kernel
# --------------------------------------------------------------------------- #
def _make_resblock_kernel(Hs, L, hw, matmul_dtype):
    inv_hw = 1.0 / hw

    def kernel(x_ref, band_ref, proj_ref, o_ref):
        x2 = x_ref[0].astype(jnp.float32)        # (Hs, L), 128-lane dense
        proj = proj_ref[...]                     # (L, L) f32, resident

        def conv3x3(y2, band):
            """3x3 conv (zero padding) as a single K-stacked MXU matmul."""
            z = jnp.zeros((1, L), jnp.float32)
            up = jnp.concatenate([z, y2[:-1]], axis=0)    # folded row r-1 (0 at r=0)
            dn = jnp.concatenate([y2[1:], z], axis=0)     # folded row r+1 (0 at r=Hs-1)
            rows = jnp.concatenate([up, y2, dn], axis=1)  # (Hs, 3L), lane-aligned
            return jnp.dot(rows.astype(matmul_dtype), band,
                           preferred_element_type=jnp.float32)   # (Hs, L) f32

        def inorm(y2):
            """InstanceNorm (biased var, eps=1e-5, no affine), two-pass variance."""
            rsum = jnp.sum(y2, axis=0, keepdims=True)                        # (1, L)
            mu = jnp.dot(rsum, proj,
                         preferred_element_type=jnp.float32) * inv_hw        # (1, L)
            xc = y2 - mu
            ssum = jnp.sum(xc * xc, axis=0, keepdims=True)                   # (1, L)
            var = jnp.dot(ssum, proj,
                          preferred_element_type=jnp.float32) * inv_hw       # (1, L)
            return xc * jax.lax.rsqrt(var + EPS)

        # Conv2dBlock #1: conv -> InstanceNorm -> ReLU
        h = jnp.maximum(inorm(conv3x3(x2, band_ref[0])), 0.0)
        # Conv2dBlock #2: conv -> InstanceNorm (activation='none')
        h = inorm(conv3x3(h, band_ref[1]))
        # Residual add; (Hs, L) whole-vreg store.
        o_ref[0] = (h + x2).astype(o_ref.dtype)

    return kernel


# --------------------------------------------------------------------------- #
# Wrapper
# --------------------------------------------------------------------------- #
def resblock_pallas(x_nhwc, w1_oihw, w2_oihw, *, matmul_dtype=jnp.float32):
    B, H, W, C = x_nhwc.shape
    assert H % 2 == 0, "row-pair lane folding requires even H"
    Hs, L = H // 2, 2 * W * C                      # here (8, 128): lane-dense

    # Row-major reshape folds image rows (2r, 2r+1) into the lane dimension.
    x_folded = x_nhwc.reshape(B, Hs, L)

    band = jnp.asarray(
        np.stack([_folded_band(w1_oihw, W), _folded_band(w2_oihw, W)]),
        dtype=matmul_dtype)                        # (2, 3L, L), resident in VMEM
    proj = jnp.asarray(_channel_projector(W, C), jnp.float32)   # (L, L)

    kernel = _make_resblock_kernel(Hs, L, float(H * W), matmul_dtype)

    grid_spec = pltpu.PrefetchScalarGridSpec(
        num_scalar_prefetch=0,
        grid=(B,),                                  # one image per step
        in_specs=[
            pl.BlockSpec((1, Hs, L), lambda b: (b, 0, 0)),
            pl.BlockSpec((2, 3 * L, L), lambda b: (0, 0, 0)),   # resident weights
            pl.BlockSpec((L, L), lambda b: (0, 0)),             # resident projector
        ],
        out_specs=pl.BlockSpec((1, Hs, L), lambda b: (b, 0, 0)),
    )
    out = pl.pallas_call(
        kernel,
        out_shape=jax.ShapeDtypeStruct((B, Hs, L), x_nhwc.dtype),
        grid_spec=grid_spec,
        compiler_params=pltpu.CompilerParams(
            dimension_semantics=("parallel",)),     # v7x: images split across TCs
    )(x_folded, band, proj)
    return out.reshape(B, H, W, C)


# --------------------------------------------------------------------------- #
# Pure-JAX reference (matches the PyTorch module, NCHW / OIHW)
# --------------------------------------------------------------------------- #
def resblock_ref(x_nchw, w1_oihw, w2_oihw):
    def conv(x, w):
        return jax.lax.conv_general_dilated(
            x, w, window_strides=(1, 1), padding=((1, 1), (1, 1)),
            dimension_numbers=("NCHW", "OIHW", "NCHW"))

    def inorm(y):
        mu = jnp.mean(y, axis=(2, 3), keepdims=True)
        var = jnp.mean((y - mu) ** 2, axis=(2, 3), keepdims=True)
        return (y - mu) / jnp.sqrt(var + EPS)

    h = jax.nn.relu(inorm(conv(x_nchw, w1_oihw)))
    h = inorm(conv(h, w2_oihw))
    return h + x_nchw


if __name__ == "__main__":
    # ResBlock(dim=4) applied to x of shape (B=2, C=4, H=16, W=16), NCHW.
    B, C, H, W = 2, 4, 16, 16
    key = jax.random.PRNGKey(0)
    kx, k1, k2 = jax.random.split(key, 3)
    x_nchw = jax.random.normal(kx, (B, C, H, W), jnp.float32)

    # PyTorch nn.Conv2d weight shape: (C_out, C_in, kH, kW); deterministic init.
    fan_in = C * 3 * 3
    w1_oihw = jax.random.normal(k1, (C, C, 3, 3), jnp.float32) / jnp.sqrt(fan_in)
    w2_oihw = jax.random.normal(k2, (C, C, 3, 3), jnp.float32) / jnp.sqrt(fan_in)

    x_nhwc = jnp.transpose(x_nchw, (0, 2, 3, 1))
    ref = resblock_ref(x_nchw, w1_oihw, w2_oihw)

    # f32 MXU operands: strict check against the f32 reference.
    out_f32 = jax.block_until_ready(
        resblock_pallas(x_nhwc, w1_oihw, w2_oihw, matmul_dtype=jnp.float32))
    err32 = float(jnp.max(jnp.abs(jnp.transpose(out_f32, (0, 3, 1, 2)) - ref)))
    assert err32 < 1e-3, f"f32 max abs error {err32}"

    # bf16 MXU operands (recommended setting on v6e/v7x; f32 accumulation kept):
    # same kernel, bf16-resident band; checked at bf16-appropriate tolerance.
    out_bf16 = jax.block_until_ready(
        resblock_pallas(x_nhwc, w1_oihw, w2_oihw, matmul_dtype=jnp.bfloat16))
    errbf = float(jnp.max(jnp.abs(jnp.transpose(out_bf16, (0, 3, 1, 2)) - ref)))
    assert errbf < 5e-2, f"bf16 max abs error {errbf}"

    print("KERNEL_OK")
</pallas_src>

<mosaic_0001>
module attributes {stable_mosaic.version = 11 : i64} {
  func.func @kernel(%arg0: i32, %arg1: memref<1x8x128xf32, #tpu.memory_space<vmem>>, %arg2: memref<2x384x128xf32, #tpu.memory_space<vmem>>, %arg3: memref<128x128xf32, #tpu.memory_space<vmem>>, %arg4: memref<1x8x128xf32, #tpu.memory_space<vmem>>) attributes {dimension_semantics = [#tpu.dimension_semantics<parallel>], iteration_bounds = array<i64: 2>, scalar_prefetch = 0 : i64, scratch_operands = 0 : i64, tpu.core_type = #tpu.core_type<tc>, window_params = [{transform_indices = @transform_0, window_bounds = array<i64: 1, 8, 128>}, {pipeline_mode = #tpu.pipeline_mode<synchronous>, transform_indices = @transform_1, window_bounds = array<i64: 2, 384, 128>}, {pipeline_mode = #tpu.pipeline_mode<synchronous>, transform_indices = @transform_2, window_bounds = array<i64: 128, 128>}, {transform_indices = @transform_3, window_bounds = array<i64: 1, 8, 128>}]} {
    %c0 = arith.constant 0 : index
    %c0_0 = arith.constant 0 : index
    %c0_1 = arith.constant 0 : index
    %0 = vector.load %arg1[%c0, %c0_0, %c0_1] : memref<1x8x128xf32, #tpu.memory_space<vmem>>, vector<1x8x128xf32>
    %1 = vector.shape_cast %0 : vector<1x8x128xf32> to vector<8x128xf32>
    %c0_2 = arith.constant 0 : index
    %c0_3 = arith.constant 0 : index
    %2 = vector.load %arg3[%c0_2, %c0_3] : memref<128x128xf32, #tpu.memory_space<vmem>>, vector<128x128xf32>
    %c0_4 = arith.constant 0 : index
    %c0_5 = arith.constant 0 : index
    %c0_6 = arith.constant 0 : index
    %3 = vector.load %arg2[%c0_4, %c0_5, %c0_6] : memref<2x384x128xf32, #tpu.memory_space<vmem>>, vector<1x384x128xf32>
    %4 = vector.shape_cast %3 : vector<1x384x128xf32> to vector<384x128xf32>
    %cst = arith.constant 0.000000e+00 : f32
    %5 = vector.broadcast %cst : f32 to vector<1x128xf32>
    %6 = vector.extract_strided_slice %1 {offsets = [0, 0], sizes = [7, 128], strides = [1, 1]} : vector<8x128xf32> to vector<7x128xf32>
    %7 = tpu.concatenate %5, %6 in 0 : vector<1x128xf32>, vector<7x128xf32> -> vector<8x128xf32>
    %8 = vector.extract_strided_slice %1 {offsets = [1, 0], sizes = [7, 128], strides = [1, 1]} : vector<8x128xf32> to vector<7x128xf32>
    %9 = tpu.concatenate %8, %5 in 0 : vector<7x128xf32>, vector<1x128xf32> -> vector<8x128xf32>
    %10 = tpu.concatenate %7, %1, %9 in 1 : vector<8x128xf32>, vector<8x128xf32>, vector<8x128xf32> -> vector<8x384xf32>
    %cst_7 = arith.constant dense<0.000000e+00> : vector<8x128xf32>
    %11 = tpu.matmul %10, %4, %cst_7 {dimension_numbers = #tpu.dot_dimension_numbers<[1], [0], [0], [1], [0, 0, 1, 1], [], []>} : vector<8x384xf32>, vector<384x128xf32>, vector<8x128xf32> -> vector<8x128xf32>
    %cst_8 = arith.constant dense<0.000000e+00> : vector<128xf32>
    %12 = vector.multi_reduction <add>, %11, %cst_8 [0] : vector<8x128xf32> to vector<128xf32>
    %13 = vector.shape_cast %12 : vector<128xf32> to vector<1x128xf32>
    %cst_9 = arith.constant dense<0.000000e+00> : vector<1x128xf32>
    %14 = tpu.matmul %13, %2, %cst_9 {dimension_numbers = #tpu.dot_dimension_numbers<[1], [0], [0], [1], [0, 0, 1, 1], [], []>} : vector<1x128xf32>, vector<128x128xf32>, vector<1x128xf32> -> vector<1x128xf32>
    %cst_10 = arith.constant 3.906250e-03 : f32
    %15 = vector.broadcast %cst_10 : f32 to vector<1x128xf32>
    %16 = arith.mulf %14, %15 : vector<1x128xf32>
    %17 = vector.broadcast %16 : vector<1x128xf32> to vector<8x128xf32>
    %18 = arith.subf %11, %17 : vector<8x128xf32>
    %19 = arith.mulf %18, %18 : vector<8x128xf32>
    %cst_11 = arith.constant dense<0.000000e+00> : vector<128xf32>
    %20 = vector.multi_reduction <add>, %19, %cst_11 [0] : vector<8x128xf32> to vector<128xf32>
    %21 = vector.shape_cast %20 : vector<128xf32> to vector<1x128xf32>
    %cst_12 = arith.constant dense<0.000000e+00> : vector<1x128xf32>
    %22 = tpu.matmul %21, %2, %cst_12 {dimension_numbers = #tpu.dot_dimension_numbers<[1], [0], [0], [1], [0, 0, 1, 1], [], []>} : vector<1x128xf32>, vector<128x128xf32>, vector<1x128xf32> -> vector<1x128xf32>
    %cst_13 = arith.constant 3.906250e-03 : f32
    %23 = vector.broadcast %cst_13 : f32 to vector<1x128xf32>
    %24 = arith.mulf %22, %23 : vector<1x128xf32>
    %cst_14 = arith.constant 9.99999974E-6 : f32
    %25 = vector.broadcast %cst_14 : f32 to vector<1x128xf32>
    %26 = arith.addf %24, %25 : vector<1x128xf32>
    %27 = math.rsqrt %26 : vector<1x128xf32>
    %28 = vector.broadcast %27 : vector<1x128xf32> to vector<8x128xf32>
    %29 = arith.mulf %18, %28 : vector<8x128xf32>
    %cst_15 = arith.constant 0.000000e+00 : f32
    %30 = vector.broadcast %cst_15 : f32 to vector<8x128xf32>
    %31 = arith.maximumf %29, %30 : vector<8x128xf32>
    %c1 = arith.constant 1 : index
    %c0_16 = arith.constant 0 : index
    %c0_17 = arith.constant 0 : index
    %32 = vector.load %arg2[%c1, %c0_16, %c0_17] : memref<2x384x128xf32, #tpu.memory_space<vmem>>, vector<1x384x128xf32>
    %33 = vector.shape_cast %32 : vector<1x384x128xf32> to vector<384x128xf32>
    %cst_18 = arith.constant 0.000000e+00 : f32
    %34 = vector.broadcast %cst_18 : f32 to vector<1x128xf32>
    %35 = vector.extract_strided_slice %31 {offsets = [0, 0], sizes = [7, 128], strides = [1, 1]} : vector<8x128xf32> to vector<7x128xf32>
    %36 = tpu.concatenate %34, %35 in 0 : vector<1x128xf32>, vector<7x128xf32> -> vector<8x128xf32>
    %37 = vector.extract_strided_slice %31 {offsets = [1, 0], sizes = [7, 128], strides = [1, 1]} : vector<8x128xf32> to vector<7x128xf32>
    %38 = tpu.concatenate %37, %34 in 0 : vector<7x128xf32>, vector<1x128xf32> -> vector<8x128xf32>
    %39 = tpu.concatenate %36, %31, %38 in 1 : vector<8x128xf32>, vector<8x128xf32>, vector<8x128xf32> -> vector<8x384xf32>
    %cst_19 = arith.constant dense<0.000000e+00> : vector<8x128xf32>
    %40 = tpu.matmul %39, %33, %cst_19 {dimension_numbers = #tpu.dot_dimension_numbers<[1], [0], [0], [1], [0, 0, 1, 1], [], []>} : vector<8x384xf32>, vector<384x128xf32>, vector<8x128xf32> -> vector<8x128xf32>
    %cst_20 = arith.constant dense<0.000000e+00> : vector<128xf32>
    %41 = vector.multi_reduction <add>, %40, %cst_20 [0] : vector<8x128xf32> to vector<128xf32>
    %42 = vector.shape_cast %41 : vector<128xf32> to vector<1x128xf32>
    %cst_21 = arith.constant dense<0.000000e+00> : vector<1x128xf32>
    %43 = tpu.matmul %42, %2, %cst_21 {dimension_numbers = #tpu.dot_dimension_numbers<[1], [0], [0], [1], [0, 0, 1, 1], [], []>} : vector<1x128xf32>, vector<128x128xf32>, vector<1x128xf32> -> vector<1x128xf32>
    %cst_22 = arith.constant 3.906250e-03 : f32
    %44 = vector.broadcast %cst_22 : f32 to vector<1x128xf32>
    %45 = arith.mulf %43, %44 : vector<1x128xf32>
    %46 = vector.broadcast %45 : vector<1x128xf32> to vector<8x128xf32>
    %47 = arith.subf %40, %46 : vector<8x128xf32>
    %48 = arith.mulf %47, %47 : vector<8x128xf32>
    %cst_23 = arith.constant dense<0.000000e+00> : vector<128xf32>
    %49 = vector.multi_reduction <add>, %48, %cst_23 [0] : vector<8x128xf32> to vector<128xf32>
    %50 = vector.shape_cast %49 : vector<128xf32> to vector<1x128xf32>
    %cst_24 = arith.constant dense<0.000000e+00> : vector<1x128xf32>
    %51 = tpu.matmul %50, %2, %cst_24 {dimension_numbers = #tpu.dot_dimension_numbers<[1], [0], [0], [1], [0, 0, 1, 1], [], []>} : vector<1x128xf32>, vector<128x128xf32>, vector<1x128xf32> -> vector<1x128xf32>
    %cst_25 = arith.constant 3.906250e-03 : f32
    %52 = vector.broadcast %cst_25 : f32 to vector<1x128xf32>
    %53 = arith.mulf %51, %52 : vector<1x128xf32>
    %cst_26 = arith.constant 9.99999974E-6 : f32
    %54 = vector.broadcast %cst_26 : f32 to vector<1x128xf32>
    %55 = arith.addf %53, %54 : vector<1x128xf32>
    %56 = math.rsqrt %55 : vector<1x128xf32>
    %57 = vector.broadcast %56 : vector<1x128xf32> to vector<8x128xf32>
    %58 = arith.mulf %47, %57 : vector<8x128xf32>
    %59 = arith.addf %58, %1 : vector<8x128xf32>
    %c0_27 = arith.constant 0 : index
    %c0_28 = arith.constant 0 : index
    %c0_29 = arith.constant 0 : index
    %60 = vector.load %arg4[%c0_27, %c0_28, %c0_29] : memref<1x8x128xf32, #tpu.memory_space<vmem>>, vector<1x8x128xf32>
    %61 = vector.shape_cast %60 : vector<1x8x128xf32> to vector<8x128xf32>
    %62 = vector.shape_cast %59 : vector<8x128xf32> to vector<1x8x128xf32>
    tpu.vector_store %arg4[%c0_27, %c0_28, %c0_29], %62 {strides = array<i32>} : memref<1x8x128xf32, #tpu.memory_space<vmem>>, vector<1x8x128xf32>,
    return
  }
  func.func @transform_0(%arg0: i32) -> (i32, i32, i32) {
    %c0_i32 = arith.constant 0 : i32
    %c0_i32_0 = arith.constant 0 : i32
    %c0_i32_1 = arith.constant 0 : i32
    return %arg0, %c0_i32, %c0_i32_0 : i32, i32, i32
  }
  func.func @transform_1(%arg0: i32) -> (i32, i32, i32) {
    %c0_i32 = arith.constant 0 : i32
    %c0_i32_0 = arith.constant 0 : i32
    %c0_i32_1 = arith.constant 0 : i32
    %c0_i32_2 = arith.constant 0 : i32
    return %c0_i32, %c0_i32_0, %c0_i32_1 : i32, i32, i32
  }
  func.func @transform_2(%arg0: i32) -> (i32, i32) {
    %c0_i32 = arith.constant 0 : i32
    %c0_i32_0 = arith.constant 0 : i32
    %c0_i32_1 = arith.constant 0 : i32
    return %c0_i32, %c0_i32_0 : i32, i32
  }
  func.func @transform_3(%arg0: i32) -> (i32, i32, i32) {
    %c0_i32 = arith.constant 0 : i32
    %c0_i32_0 = arith.constant 0 : i32
    %c0_i32_1 = arith.constant 0 : i32
    return %arg0, %c0_i32, %c0_i32_0 : i32, i32, i32
  }
}

</mosaic_0001>

<llo_original>
// kernel: tpu_custom_call.1
$region0: #{tpu_custom_call.1}
  #allocation0 [shape = 'u32[]', space=smem, size = 0x4, offset = 0x4, fixed_abs, tag = 'smem constant byte address 0x4 - core index']
  #allocation1 [shape = 'u32[144,128]{1,0:T(1,128)}', space=vmem, size = 0x12000, scoped, tag = 'internal scratch']
  %s0 = inlined_call_operand.hbm [shape: f32[2,8,128], index: 0, kind: input, shape index: {}]
  %s1 = inlined_call_operand.hbm [shape: f32[2,384,128], index: 1, kind: input, shape index: {}]
  %s2 = inlined_call_operand.hbm [shape: f32[128,128], index: 2, kind: input, shape index: {}]
  %s3 = inlined_call_operand.hbm [shape: f32[2,8,128], index: 3, kind: output, shape index: {}]
  %s4 = sld [smem:[#allocation0]]
  $region57: #{tpu_custom_call.1} parent=0
    _
  %s6 = ssub.s32 1, %s4
  %s7 = scalar_select 0, %s6, %s4
  $region1: #{tpu_custom_call.1} parent=0
    #allocation2 [shape = 'u8[8192]{0}', space=vmem, size = 0x2000, scoped, tag = 'input window, operand 0']
    #allocation3 [shape = 's32[2]{0}', space=sflag, size = 0x8, scoped, tag = 'scoped memory for tpu_custom_call.1']
    #allocation4 [shape = 's32[2]{0}', space=sflag, size = 0x8, scoped, tag = 'scoped memory for tpu_custom_call.1']
    #allocation5 [shape = 'u8[393216]{0}', space=vmem, size = 0x60000, scoped, tag = 'input window, operand 1, single buffered']
    #allocation6 [shape = 's32[1]{0}', space=sflag, size = 0x4, scoped, tag = 'scoped memory for tpu_custom_call.1']
    #allocation7 [shape = 'u8[65536]{0}', space=vmem, size = 0x10000, scoped, tag = 'input window, operand 2, single buffered']
    #allocation8 [shape = 'u8[8192]{0}', space=vmem, size = 0x2000, scoped, tag = 'output window, operand 0']
    %8 = vsyncpa [#allocation3], 0
    %s9 = scalar_lea.sflag [#allocation3], 1
    %10 = vsyncpa %s9, 0
    %11 = vsyncpa [#allocation6], 0
    %12 = vsyncpa [#allocation4], 0
    %s13 = scalar_lea.sflag [#allocation4], 1
    %14 = vsyncpa %s13, 0
    loop: start=0, step=1, limit=4
    $region2: #{tpu_custom_call.1} parent=1 // loop_pre_header
      _
    $region3: #{tpu_custom_call.1} parent=1 // loop_header
      %s16 = sphi 0, %s20
      %p17 = scmp.ge.s32.totalorder %s16, 4
      %s26 = sphi 0, %s28
      %s29 = sphi 0, %s26
      %s30 = sphi 0, %s29
      %s46 = sphi 0, %s30
      %s50 = sphi 0, %s50
      %s52 = sphi 0, %s50
      %s53 = sphi 0, %s52
      %s67 = sphi 0, %s53
      %s71 = sphi 0, %s71
      %s73 = sphi 0, %s71
      %s74 = sphi 0, %s73
      %s88 = sphi 0, %s74
      %s94 = sphi 0, %s96
      %s97 = sphi 0, %s94
      %s98 = sphi 0, %s97
      %s114 = sphi 0, %s98
    $region4: #{tpu_custom_call.1} parent=1 // loop_header_branch
      %19 = sbr.rel (%p17) target = $region8
    $region5: #{tpu_custom_call.1} parent=1 // loop_body
      %s21 = ssub.s32 %s16, 1
      %s22 = ssub.s32 %s16, 2
      %s23 = sadd.s32 %s16, 1
      %s24 = ssub.s32 %s16, %s23
      %p25 = scmp.eq.s32.totalorder %s24, 0
      %s27 = sadd.s32 %s26, 1
      %s28 = scalar_select %p25, %s26, %s27
      %p31 = pneg %p25
      %p32 = scmp.eq.s32.totalorder %s16, 1
      %p33 = por %p31, %p32
      %p34 = scmp.ne.s32.totalorder %s26, %s29
      %p35 = scmp.eq.s32.totalorder %s16, 0
      %p36 = por %p34, %p35
      %p37 = scmp.ne.s32.totalorder %s26, %s29
      %p38 = scmp.eq.s32.totalorder %s21, 1
      %p39 = por %p37, %p38
      %p40 = scmp.ne.s32.totalorder %s29, %s30
      %p41 = scmp.eq.s32.totalorder %s21, 0
      %p42 = por %p40, %p41
      %p43 = scmp.ne.s32.totalorder %s29, %s30
      %p44 = scmp.eq.s32.totalorder %s22, 1
      %p45 = por %p43, %p44
      %p47 = scmp.ne.s32.totalorder %s30, %s46
      %p48 = scmp.eq.s32.totalorder %s22, 0
      %p49 = por %p47, %p48
      %s51 = sadd.s32 %s50, 1
      %p54 = scmp.eq.s32.totalorder %s16, 1
      %p55 = scmp.ne.s32.totalorder %s50, %s52
      %p56 = scmp.eq.s32.totalorder %s16, 0
      %p57 = por %p55, %p56
      %p58 = scmp.ne.s32.totalorder %s50, %s52
      %p59 = scmp.eq.s32.totalorder %s21, 1
      %p60 = por %p58, %p59
      %p61 = scmp.ne.s32.totalorder %s52, %s53
      %p62 = scmp.eq.s32.totalorder %s21, 0
      %p63 = por %p61, %p62
      %p64 = scmp.ne.s32.totalorder %s52, %s53
      %p65 = scmp.eq.s32.totalorder %s22, 1
      %p66 = por %p64, %p65
      %p68 = scmp.ne.s32.totalorder %s53, %s67
      %p69 = scmp.eq.s32.totalorder %s22, 0
      %p70 = por %p68, %p69
      %s72 = sadd.s32 %s71, 1
      %p75 = scmp.eq.s32.totalorder %s16, 1
      %p76 = scmp.ne.s32.totalorder %s71, %s73
      %p77 = scmp.eq.s32.totalorder %s16, 0
      %p78 = por %p76, %p77
      %p79 = scmp.ne.s32.totalorder %s71, %s73
      %p80 = scmp.eq.s32.totalorder %s21, 1
      %p81 = por %p79, %p80
      %p82 = scmp.ne.s32.totalorder %s73, %s74
      %p83 = scmp.eq.s32.totalorder %s21, 0
      %p84 = por %p82, %p83
      %p85 = scmp.ne.s32.totalorder %s73, %s74
      %p86 = scmp.eq.s32.totalorder %s22, 1
      %p87 = por %p85, %p86
      %p89 = scmp.ne.s32.totalorder %s74, %s88
      %p90 = scmp.eq.s32.totalorder %s22, 0
      %p91 = por %p89, %p90
      %s92 = ssub.s32 %s16, %s23
      %p93 = scmp.eq.s32.totalorder %s92, 0
      %s95 = sadd.s32 %s94, 1
      %s96 = scalar_select %p93, %s94, %s95
      %p99 = pneg %p93
      %p100 = scmp.eq.s32.totalorder %s16, 1
      %p101 = por %p99, %p100
      %p102 = scmp.ne.s32.totalorder %s94, %s97
      %p103 = scmp.eq.s32.totalorder %s16, 0
      %p104 = por %p102, %p103
      %p105 = scmp.ne.s32.totalorder %s94, %s97
      %p106 = scmp.eq.s32.totalorder %s21, 1
      %p107 = por %p105, %p106
      %p108 = scmp.ne.s32.totalorder %s97, %s98
      %p109 = scmp.eq.s32.totalorder %s21, 0
      %p110 = por %p108, %p109
      %p111 = scmp.ne.s32.totalorder %s97, %s98
      %p112 = scmp.eq.s32.totalorder %s22, 1
      %p113 = por %p111, %p112
      %p115 = scmp.ne.s32.totalorder %s98, %s114
      %p116 = scmp.eq.s32.totalorder %s22, 0
      %p117 = por %p115, %p116
      %p118 = scmp.le.s32.totalorder 1, %s16
      %p119 = scmp.lt.s32.totalorder %s16, 3
      %p120 = pnand %p118, %p119
      %p121 = pneg %p120
      // Predicated region
      $region9: #{tpu_custom_call.1} parent=5 // pred_check
        _
      $region10: #{tpu_custom_call.1} parent=5 // pred_check_branch
        %123 = sbr.rel (%p120) target = $region12
      $region11: #{tpu_custom_call.1} parent=5 // pred_region
        %s124 = ssub.s32 %s16, 1
        // Predicated region
        $region13: #{tpu_custom_call.1} parent=11 // pred_check
          %p125 = pneg %p63
        $region14: #{tpu_custom_call.1} parent=11 // pred_check_branch
          %127 = sbr.rel (%p125) target = $region16
        $region15: #{tpu_custom_call.1} parent=11 // pred_region
          %s129 = ssub.s32 12288, 12288
          %130 = vsyncadd [#allocation6], %s129
          %s131 = sshll.u32 [#allocation5], 4
          %s132 = int_to_ptr.vmem [resolvable:$true] %s131
          %137 = dma.hbm_to_vmem [thread:$0]  %s1, 12288, %s132, [#allocation6], 128, 128, 8
        $region16: #{tpu_custom_call.1} parent=11 // pred_fallthru
          _
        // Predicated region
        $region17: #{tpu_custom_call.1} parent=11 // pred_check
          %p138 = pneg %p84
        $region18: #{tpu_custom_call.1} parent=11 // pred_check_branch
          %140 = sbr.rel (%p138) target = $region20
        $region19: #{tpu_custom_call.1} parent=11 // pred_region
          %s142 = ssub.s32 2048, 2048
          %143 = vsyncadd [#allocation6], %s142
          %s144 = sshll.u32 [#allocation7], 4
          %s145 = int_to_ptr.vmem [resolvable:$true] %s144
          %150 = dma.hbm_to_vmem [thread:$0]  %s2, 2048, %s145, [#allocation6], 128, 128, 8
        $region20: #{tpu_custom_call.1} parent=11 // pred_fallthru
          _
      $region12: #{tpu_custom_call.1} parent=5 // pred_fallthru
        _
      %p151 = scmp.lt.s32.totalorder %s16, 2
      // Predicated region
      $region21: #{tpu_custom_call.1} parent=5 // pred_check
        %p152 = pneg %p151
      $region22: #{tpu_custom_call.1} parent=5 // pred_check_branch
        %154 = sbr.rel (%p152) target = $region24
      $region23: #{tpu_custom_call.1} parent=5 // pred_region
        // Predicated region
        $region25: #{tpu_custom_call.1} parent=23 // pred_check
          %p155 = pneg %p36
        $region26: #{tpu_custom_call.1} parent=23 // pred_check_branch
          %157 = sbr.rel (%p155) target = $region28
        $region27: #{tpu_custom_call.1} parent=23 // pred_region
          %s158 = sand.u32 %s26, 1
          %s159 = scalar_lea.sflag [#allocation3], %s158
          %s160 = sand.u32 %s26, 1
          %s161 = smul.addr %s160, 8
          %s162 = scalar_lea.vmem [#allocation2], %s161
          %s164 = ssub.s32 128, 128
          %165 = vsyncadd %s159, %s164
          %s166 = smul.addr %s16, 128
          %s167 = scalar_lea.hbm %s0, %s166
          %s169 = sshll.u32 %s162, 4
          %s170 = int_to_ptr.vmem [resolvable:$true] %s169
          %172 = dma.hbm_to_vmem [thread:$0]  %s167, 128, %s170, %s159
        $region28: #{tpu_custom_call.1} parent=23 // pred_fallthru
          _
      $region24: #{tpu_custom_call.1} parent=5 // pred_fallthru
        _
      %p173 = scmp.le.s32.totalorder 1, %s16
      %p174 = scmp.lt.s32.totalorder %s16, 3
      %p175 = pnand %p173, %p174
      %p176 = pneg %p175
      // Predicated region
      $region29: #{tpu_custom_call.1} parent=5 // pred_check
        _
      $region30: #{tpu_custom_call.1} parent=5 // pred_check_branch
        %178 = sbr.rel (%p175) target = $region32
      $region31: #{tpu_custom_call.1} parent=5 // pred_region
        %s179 = ssub.s32 %s16, 1
        %s180 = sand.u32 %s29, 1
        %s181 = scalar_lea.sflag [#allocation3], %s180
        %s182 = sand.u32 %s29, 1
        %s183 = smul.addr %s182, 8
        %s184 = scalar_lea.vmem [#allocation2], %s183
        // Predicated region
        $region33: #{tpu_custom_call.1} parent=31 // pred_check
          %p185 = pneg %p42
        $region34: #{tpu_custom_call.1} parent=31 // pred_check_branch
          %187 = sbr.rel (%p185) target = $region36
        $region35: #{tpu_custom_call.1} parent=31 // pred_region
          %188 = dma.done %s181, 128
        $region36: #{tpu_custom_call.1} parent=31 // pred_fallthru
          _
        // Predicated region
        $region37: #{tpu_custom_call.1} parent=31 // pred_check
          %p189 = pneg %p63
        $region38: #{tpu_custom_call.1} parent=31 // pred_check_branch
          %191 = sbr.rel (%p189) target = $region40
        $region39: #{tpu_custom_call.1} parent=31 // pred_region
          %192 = dma.done [#allocation6], 12288
        $region40: #{tpu_custom_call.1} parent=31 // pred_fallthru
          _
        // Predicated region
        $region41: #{tpu_custom_call.1} parent=31 // pred_check
          %p193 = pneg %p84
        $region42: #{tpu_custom_call.1} parent=31 // pred_check_branch
          %195 = sbr.rel (%p193) target = $region44
        $region43: #{tpu_custom_call.1} parent=31 // pred_region
          %196 = dma.done [#allocation6], 2048
        $region44: #{tpu_custom_call.1} parent=31 // pred_fallthru
          _
        %s197 = sand.u32 %s29, 1
        %s198 = scalar_lea.sflag [#allocation3], %s197
        %s199 = sand.u32 %s29, 1
        %s200 = smul.addr %s199, 8
        %s201 = scalar_lea.vmem [#allocation2], %s200
        %p202 = pneg %p42
        %p203 = pneg %p39
        %p204 = pneg %p63
        %p205 = pneg %p60
        %p206 = pneg %p84
        %p207 = pneg %p81
        %p208 = pneg %p110
        %p209 = pneg %p107
        %s210 = sand.u32 %s97, 1
        %s211 = scalar_lea.sflag [#allocation4], %s210
        %s212 = sand.u32 %s97, 1
        %s213 = smul.addr %s212, 8
        %s214 = scalar_lea.vmem [#allocation8], %s213
        %v215 = vld [vmem:[%s184] sm:$0xff]
        %v216 = vld [vmem:[#allocation7] sm:$0xff]
        %v217 = vld [vmem:[#allocation7 + $0x8] sm:$0xff]
        %v218 = vld [vmem:[#allocation7 + $0x10] sm:$0xff]
        %v219 = vld [vmem:[#allocation7 + $0x18] sm:$0xff]
        %v220 = vld [vmem:[#allocation7 + $0x20] sm:$0xff]
        %v221 = vld [vmem:[#allocation7 + $0x28] sm:$0xff]
        %v222 = vld [vmem:[#allocation7 + $0x30] sm:$0xff]
        %v223 = vld [vmem:[#allocation7 + $0x38] sm:$0xff]
        %v224 = vld [vmem:[#allocation7 + $0x40] sm:$0xff]
        %v225 = vld [vmem:[#allocation7 + $0x48] sm:$0xff]
        %v226 = vld [vmem:[#allocation7 + $0x50] sm:$0xff]
        %v227 = vld [vmem:[#allocation7 + $0x58] sm:$0xff]
        %v228 = vld [vmem:[#allocation7 + $0x60] sm:$0xff]
        %v229 = vld [vmem:[#allocation7 + $0x68] sm:$0xff]
        %v230 = vld [vmem:[#allocation7 + $0x70] sm:$0xff]
        %v231 = vld [vmem:[#allocation7 + $0x78] sm:$0xff]
        %v232 = vld [vmem:[#allocation5] sm:$0xff]
        %v233 = vld [vmem:[#allocation5 + $0x8] sm:$0xff]
        %v234 = vld [vmem:[#allocation5 + $0x10] sm:$0xff]
        %v235 = vld [vmem:[#allocation5 + $0x18] sm:$0xff]
        %v236 = vld [vmem:[#allocation5 + $0x20] sm:$0xff]
        %v237 = vld [vmem:[#allocation5 + $0x28] sm:$0xff]
        %v238 = vld [vmem:[#allocation5 + $0x30] sm:$0xff]
        %v239 = vld [vmem:[#allocation5 + $0x38] sm:$0xff]
        %v240 = vld [vmem:[#allocation5 + $0x40] sm:$0xff]
        %v241 = vld [vmem:[#allocation5 + $0x48] sm:$0xff]
        %v242 = vld [vmem:[#allocation5 + $0x50] sm:$0xff]
        %v243 = vld [vmem:[#allocation5 + $0x58] sm:$0xff]
        %v244 = vld [vmem:[#allocation5 + $0x60] sm:$0xff]
        %v245 = vld [vmem:[#allocation5 + $0x68] sm:$0xff]
        %v246 = vld [vmem:[#allocation5 + $0x70] sm:$0xff]
        %v247 = vld [vmem:[#allocation5 + $0x78] sm:$0xff]
        %v248 = vld [vmem:[#allocation5 + $0x80] sm:$0xff]
        %v249 = vld [vmem:[#allocation5 + $0x88] sm:$0xff]
        %v250 = vld [vmem:[#allocation5 + $0x90] sm:$0xff]
        %v251 = vld [vmem:[#allocation5 + $0x98] sm:$0xff]
        %v252 = vld [vmem:[#allocation5 + $0xa0] sm:$0xff]
        %v253 = vld [vmem:[#allocation5 + $0xa8] sm:$0xff]
        %v254 = vld [vmem:[#allocation5 + $0xb0] sm:$0xff]
        %v255 = vld [vmem:[#allocation5 + $0xb8] sm:$0xff]
        %v256 = vld [vmem:[#allocation5 + $0xc0] sm:$0xff]
        %v257 = vld [vmem:[#allocation5 + $0xc8] sm:$0xff]
        %v258 = vld [vmem:[#allocation5 + $0xd0] sm:$0xff]
        %v259 = vld [vmem:[#allocation5 + $0xd8] sm:$0xff]
        %v260 = vld [vmem:[#allocation5 + $0xe0] sm:$0xff]
        %v261 = vld [vmem:[#allocation5 + $0xe8] sm:$0xff]
        %v262 = vld [vmem:[#allocation5 + $0xf0] sm:$0xff]
        %v263 = vld [vmem:[#allocation5 + $0xf8] sm:$0xff]
        %v264 = vld [vmem:[#allocation5 + $0x100] sm:$0xff]
        %v265 = vld [vmem:[#allocation5 + $0x108] sm:$0xff]
        %v266 = vld [vmem:[#allocation5 + $0x110] sm:$0xff]
        %v267 = vld [vmem:[#allocation5 + $0x118] sm:$0xff]
        %v268 = vld [vmem:[#allocation5 + $0x120] sm:$0xff]
        %v269 = vld [vmem:[#allocation5 + $0x128] sm:$0xff]
        %v270 = vld [vmem:[#allocation5 + $0x130] sm:$0xff]
        %v271 = vld [vmem:[#allocation5 + $0x138] sm:$0xff]
        %v272 = vld [vmem:[#allocation5 + $0x140] sm:$0xff]
        %v273 = vld [vmem:[#allocation5 + $0x148] sm:$0xff]
        %v274 = vld [vmem:[#allocation5 + $0x150] sm:$0xff]
        %v275 = vld [vmem:[#allocation5 + $0x158] sm:$0xff]
        %v276 = vld [vmem:[#allocation5 + $0x160] sm:$0xff]
        %v277 = vld [vmem:[#allocation5 + $0x168] sm:$0xff]
        %v278 = vld [vmem:[#allocation5 + $0x170] sm:$0xff]
        %v279 = vld [vmem:[#allocation5 + $0x178] sm:$0xff]
        %v281 = vrot.slane %v215, 7
        %vm283 = vcmask 1040384
        %v284 = vsel %vm283, 0.0, %v281
        %v285 = vrot.slane %v215, 1
        %vm287 = vcmask 1046528
        %v288 = vsel %vm287, %v285, 0.0
        %289 = vmatprep.subr.mxu0 0.0
        %290 = vmatpush1.msra.mxu0 %v232
        %291 = vmatprep.subr.mxu0 0.0
        %292 = vmatpush1.msra.mxu0 %v233
        %293 = vmatprep.subr.mxu0 0.0
        %294 = vmatpush1.msra.mxu0 %v234
        %295 = vmatprep.subr.mxu0 0.0
        %296 = vmatpush1.msra.mxu0 %v235
        %297 = vmatprep.subr.mxu0 0.0
        %298 = vmatpush1.msra.mxu0 %v236
        %299 = vmatprep.subr.mxu0 0.0
        %300 = vmatpush1.msra.mxu0 %v237
        %301 = vmatprep.subr.mxu0 0.0
        %302 = vmatpush1.msra.mxu0 %v238
        %303 = vmatprep.subr.mxu0 0.0
        %304 = vmatpush1.msra.mxu0 %v239
        %305 = vmatprep.subr.mxu0 0.0
        %306 = vmatpush1.msra.mxu0 %v240
        %307 = vmatprep.subr.mxu0 0.0
        %308 = vmatpush1.msra.mxu0 %v241
        %309 = vmatprep.subr.mxu0 0.0
        %310 = vmatpush1.msra.mxu0 %v242
        %311 = vmatprep.subr.mxu0 0.0
        %312 = vmatpush1.msra.mxu0 %v243
        %313 = vmatprep.subr.mxu0 0.0
        %314 = vmatpush1.msra.mxu0 %v244
        %315 = vmatprep.subr.mxu0 0.0
        %316 = vmatpush1.msra.mxu0 %v245
        %317 = vmatprep.subr.mxu0 0.0
        %318 = vmatpush1.msra.mxu0 %v246
        %319 = vmatprep.subr.mxu0 0.0
        %320 = vmatpush1.msra.mxu0 %v247
        %321 = vmatprep.subr.mxu0 0.0
        %322 = vmatpush1.msra.mxu0 %v248
        %323 = vmatprep.subr.mxu0 0.0
        %324 = vmatpush1.msra.mxu0 %v249
        %325 = vmatprep.subr.mxu0 0.0
        %326 = vmatpush1.msra.mxu0 %v250
        %327 = vmatprep.subr.mxu0 0.0
        %328 = vmatpush1.msra.mxu0 %v251
        %329 = vmatprep.subr.mxu0 0.0
        %330 = vmatpush1.msra.mxu0 %v252
        %331 = vmatprep.subr.mxu0 0.0
        %332 = vmatpush1.msra.mxu0 %v253
        %333 = vmatprep.subr.mxu0 0.0
        %334 = vmatpush1.msra.mxu0 %v254
        %335 = vmatprep.subr.mxu0 0.0
        %336 = vmatpush1.msra.mxu0 %v255
        %337 = vmatprep.subr.mxu0 0.0
        %338 = vmatpush1.msra.mxu0 %v256
        %339 = vmatprep.subr.mxu0 0.0
        %340 = vmatpush1.msra.mxu0 %v257
        %341 = vmatprep.subr.mxu0 0.0
        %342 = vmatpush1.msra.mxu0 %v258
        %343 = vmatprep.subr.mxu0 0.0
        %344 = vmatpush1.msra.mxu0 %v259
        %345 = vmatprep.subr.mxu0 0.0
        %346 = vmatpush1.msra.mxu0 %v260
        %347 = vmatprep.subr.mxu0 0.0
        %348 = vmatpush1.msra.mxu0 %v261
        %349 = vmatprep.subr.mxu0 0.0
        %350 = vmatpush1.msra.mxu0 %v262
        %351 = vmatprep.subr.mxu0 0.0
        %352 = vmatpush1.msra.mxu0 %v263
        %353 = vmatprep.mubr.f32.mxu0 %v215
        %354 = vmatmul.mubr.f32.gmra.mrb[0].mxu0 %v284
        %v355 = vpop.f32.mrb[0].mxu0
        %v356 = vadd.f32 0.0, %v355
        %v357 = vpop.f32.mrb[0].mxu0
        %358 = vdwg.mxu0
        %359 = vmatprep.subr.mxu0 0.0
        %360 = vmatpush1.msra.mxu0 %v264
        %361 = vmatprep.subr.mxu0 0.0
        %362 = vmatpush1.msra.mxu0 %v265
        %363 = vmatprep.subr.mxu0 0.0
        %364 = vmatpush1.msra.mxu0 %v266
        %365 = vmatprep.subr.mxu0 0.0
        %366 = vmatpush1.msra.mxu0 %v267
        %367 = vmatprep.subr.mxu0 0.0
        %368 = vmatpush1.msra.mxu0 %v268
        %369 = vmatprep.subr.mxu0 0.0
        %370 = vmatpush1.msra.mxu0 %v269
        %371 = vmatprep.subr.mxu0 0.0
        %372 = vmatpush1.msra.mxu0 %v270
        %373 = vmatprep.subr.mxu0 0.0
        %374 = vmatpush1.msra.mxu0 %v271
        %375 = vmatprep.subr.mxu0 0.0
        %376 = vmatpush1.msra.mxu0 %v272
        %377 = vmatprep.subr.mxu0 0.0
        %378 = vmatpush1.msra.mxu0 %v273
        %379 = vmatprep.subr.mxu0 0.0
        %380 = vmatpush1.msra.mxu0 %v274
        %381 = vmatprep.subr.mxu0 0.0
        %382 = vmatpush1.msra.mxu0 %v275
        %383 = vmatprep.subr.mxu0 0.0
        %384 = vmatpush1.msra.mxu0 %v276
        %385 = vmatprep.subr.mxu0 0.0
        %386 = vmatpush1.msra.mxu0 %v277
        %387 = vmatprep.subr.mxu0 0.0
        %388 = vmatpush1.msra.mxu0 %v278
        %389 = vmatprep.subr.mxu0 0.0
        %390 = vmatpush1.msra.mxu0 %v279
        %391 = vmatprep.subr.mxu0 0.0
        %392 = vmatpush1.msra.mxu0 0.0
        %393 = vmatprep.subr.mxu0 0.0
        %394 = vmatpush1.msra.mxu0 0.0
        %395 = vmatprep.subr.mxu0 0.0
        %396 = vmatpush1.msra.mxu0 0.0
        %397 = vmatprep.subr.mxu0 0.0
        %398 = vmatpush1.msra.mxu0 0.0
        %399 = vmatprep.subr.mxu0 0.0
        %400 = vmatpush1.msra.mxu0 0.0
        %401 = vmatprep.subr.mxu0 0.0
        %402 = vmatpush1.msra.mxu0 0.0
        %403 = vmatprep.subr.mxu0 0.0
        %404 = vmatpush1.msra.mxu0 0.0
        %405 = vmatprep.subr.mxu0 0.0
        %406 = vmatpush1.msra.mxu0 0.0
        %407 = vmatprep.subr.mxu0 0.0
        %408 = vmatpush1.msra.mxu0 0.0
        %409 = vmatprep.subr.mxu0 0.0
        %410 = vmatpush1.msra.mxu0 0.0
        %411 = vmatprep.subr.mxu0 0.0
        %412 = vmatpush1.msra.mxu0 0.0
        %413 = vmatprep.subr.mxu0 0.0
        %414 = vmatpush1.msra.mxu0 0.0
        %415 = vmatprep.subr.mxu0 0.0
        %416 = vmatpush1.msra.mxu0 0.0
        %417 = vmatprep.subr.mxu0 0.0
        %418 = vmatpush1.msra.mxu0 0.0
        %419 = vmatprep.subr.mxu0 0.0
        %420 = vmatpush1.msra.mxu0 0.0
        %421 = vmatprep.subr.mxu0 0.0
        %422 = vmatpush1.msra.mxu0 0.0
        %423 = vmatprep.mubr.f32.mxu0 0.0
        %424 = vmatmul.mubr.f32.gmra.mrb[0].mxu0 %v288
        %v425 = vpop.f32.mrb[0].mxu0
        %v426 = vadd.f32 %v356, %v425
        %v427 = vpop.f32.mrb[0].mxu0
        %428 = vdwg.mxu0
        %v429 = vrot.slane %v426, 4
        %v430 = vadd.f32 %v426, %v429
        %v431 = vrot.slane %v430, 2
        %v432 = vadd.f32 %v430, %v431
        %v433 = vrot.slane %v432, 1
        %v434 = vadd.f32 %v432, %v433
        %435 = vmatprep.subr.mxu0 0.0
        %436 = vmatpush1.msra.mxu0 %v216
        %437 = vmatprep.subr.mxu0 0.0
        %438 = vmatpush1.msra.mxu0 %v217
        %439 = vmatprep.subr.mxu0 0.0
        %440 = vmatpush1.msra.mxu0 %v218
        %441 = vmatprep.subr.mxu0 0.0
        %442 = vmatpush1.msra.mxu0 %v219
        %443 = vmatprep.subr.mxu0 0.0
        %444 = vmatpush1.msra.mxu0 %v220
        %445 = vmatprep.subr.mxu0 0.0
        %446 = vmatpush1.msra.mxu0 %v221
        %447 = vmatprep.subr.mxu0 0.0
        %448 = vmatpush1.msra.mxu0 %v222
        %449 = vmatprep.subr.mxu0 0.0
        %450 = vmatpush1.msra.mxu0 %v223
        %451 = vmatprep.subr.mxu0 0.0
        %452 = vmatpush1.msra.mxu0 %v224
        %453 = vmatprep.subr.mxu0 0.0
        %454 = vmatpush1.msra.mxu0 %v225
        %455 = vmatprep.subr.mxu0 0.0
        %456 = vmatpush1.msra.mxu0 %v226
        %457 = vmatprep.subr.mxu0 0.0
        %458 = vmatpush1.msra.mxu0 %v227
        %459 = vmatprep.subr.mxu0 0.0
        %460 = vmatpush1.msra.mxu0 %v228
        %461 = vmatprep.subr.mxu0 0.0
        %462 = vmatpush1.msra.mxu0 %v229
        %463 = vmatprep.subr.mxu0 0.0
        %464 = vmatpush1.msra.mxu0 %v230
        %465 = vmatprep.subr.mxu0 0.0
        %466 = vmatpush1.msra.mxu0 %v231
        %467 = vmatprep.subr.mxu0 0.0
        %468 = vmatpush1.msra.mxu0 0.0
        %469 = vmatprep.subr.mxu0 0.0
        %470 = vmatpush1.msra.mxu0 0.0
        %471 = vmatprep.subr.mxu0 0.0
        %472 = vmatpush1.msra.mxu0 0.0
        %473 = vmatprep.subr.mxu0 0.0
        %474 = vmatpush1.msra.mxu0 0.0
        %475 = vmatprep.subr.mxu0 0.0
        %476 = vmatpush1.msra.mxu0 0.0
        %477 = vmatprep.subr.mxu0 0.0
        %478 = vmatpush1.msra.mxu0 0.0
        %479 = vmatprep.subr.mxu0 0.0
        %480 = vmatpush1.msra.mxu0 0.0
        %481 = vmatprep.subr.mxu0 0.0
        %482 = vmatpush1.msra.mxu0 0.0
        %483 = vmatprep.subr.mxu0 0.0
        %484 = vmatpush1.msra.mxu0 0.0
        %485 = vmatprep.subr.mxu0 0.0
        %486 = vmatpush1.msra.mxu0 0.0
        %487 = vmatprep.subr.mxu0 0.0
        %488 = vmatpush1.msra.mxu0 0.0
        %489 = vmatprep.subr.mxu0 0.0
        %490 = vmatpush1.msra.mxu0 0.0
        %491 = vmatprep.subr.mxu0 0.0
        %492 = vmatpush1.msra.mxu0 0.0
        %493 = vmatprep.subr.mxu0 0.0
        %494 = vmatpush1.msra.mxu0 0.0
        %495 = vmatprep.subr.mxu0 0.0
        %496 = vmatpush1.msra.mxu0 0.0
        %497 = vmatprep.subr.mxu0 0.0
        %498 = vmatpush1.msra.mxu0 0.0
        %499 = vmatprep.mubr.f32.mxu0 0.0
        %500 = vmatmul.mubr.f32.gmra.mrb[0].mxu0 %v434
        %v501 = vpop.f32.mrb[0].mxu0
        %v502 = vadd.f32 0.0, %v501
        %v503 = vpop.f32.mrb[0].mxu0
        %504 = vdwg.mxu0
        %v505 = vmul.f32 %v502, 0.00390625
        %v506 = vlaneseq
        %v507 = vshrl.u32 %v506, 7
        %v508 = vsub.s32 0, %v507
        %v509 = vrot.slane %v505, %v508
        %v510 = vsub.f32 %v426, %v509
        %v511 = vmul.f32 %v510, %v510
        %v512 = vrot.slane %v511, 4
        %v513 = vadd.f32 %v511, %v512
        %v514 = vrot.slane %v513, 2
        %v515 = vadd.f32 %v513, %v514
        %v516 = vrot.slane %v515, 1
        %v517 = vadd.f32 %v515, %v516
        %518 = vmatprep.subr.mxu0 0.0
        %519 = vmatpush1.msra.mxu0 %v216
        %520 = vmatprep.subr.mxu0 0.0
        %521 = vmatpush1.msra.mxu0 %v217
        %522 = vmatprep.subr.mxu0 0.0
        %523 = vmatpush1.msra.mxu0 %v218
        %524 = vmatprep.subr.mxu0 0.0
        %525 = vmatpush1.msra.mxu0 %v219
        %526 = vmatprep.subr.mxu0 0.0
        %527 = vmatpush1.msra.mxu0 %v220
        %528 = vmatprep.subr.mxu0 0.0
        %529 = vmatpush1.msra.mxu0 %v221
        %530 = vmatprep.subr.mxu0 0.0
        %531 = vmatpush1.msra.mxu0 %v222
        %532 = vmatprep.subr.mxu0 0.0
        %533 = vmatpush1.msra.mxu0 %v223
        %534 = vmatprep.subr.mxu0 0.0
        %535 = vmatpush1.msra.mxu0 %v224
        %536 = vmatprep.subr.mxu0 0.0
        %537 = vmatpush1.msra.mxu0 %v225
        %538 = vmatprep.subr.mxu0 0.0
        %539 = vmatpush1.msra.mxu0 %v226
        %540 = vmatprep.subr.mxu0 0.0
        %541 = vmatpush1.msra.mxu0 %v227
        %542 = vmatprep.subr.mxu0 0.0
        %543 = vmatpush1.msra.mxu0 %v228
        %544 = vmatprep.subr.mxu0 0.0
        %545 = vmatpush1.msra.mxu0 %v229
        %546 = vmatprep.subr.mxu0 0.0
        %547 = vmatpush1.msra.mxu0 %v230
        %548 = vmatprep.subr.mxu0 0.0
        %549 = vmatpush1.msra.mxu0 %v231
        %550 = vmatprep.subr.mxu0 0.0
        %551 = vmatpush1.msra.mxu0 0.0
        %552 = vmatprep.subr.mxu0 0.0
        %553 = vmatpush1.msra.mxu0 0.0
        %554 = vmatprep.subr.mxu0 0.0
        %555 = vmatpush1.msra.mxu0 0.0
        %556 = vmatprep.subr.mxu0 0.0
        %557 = vmatpush1.msra.mxu0 0.0
        %558 = vmatprep.subr.mxu0 0.0
        %559 = vmatpush1.msra.mxu0 0.0
        %560 = vmatprep.subr.mxu0 0.0
        %561 = vmatpush1.msra.mxu0 0.0
        %562 = vmatprep.subr.mxu0 0.0
        %563 = vmatpush1.msra.mxu0 0.0
        %564 = vmatprep.subr.mxu0 0.0
        %565 = vmatpush1.msra.mxu0 0.0
        %566 = vmatprep.subr.mxu0 0.0
        %567 = vmatpush1.msra.mxu0 0.0
        %568 = vmatprep.subr.mxu0 0.0
        %569 = vmatpush1.msra.mxu0 0.0
        %570 = vmatprep.subr.mxu0 0.0
        %571 = vmatpush1.msra.mxu0 0.0
        %572 = vmatprep.subr.mxu0 0.0
        %573 = vmatpush1.msra.mxu0 0.0
        %574 = vmatprep.subr.mxu0 0.0
        %575 = vmatpush1.msra.mxu0 0.0
        %576 = vmatprep.subr.mxu0 0.0
        %577 = vmatpush1.msra.mxu0 0.0
        %578 = vmatprep.subr.mxu0 0.0
        %579 = vmatpush1.msra.mxu0 0.0
        %580 = vmatprep.subr.mxu0 0.0
        %581 = vmatpush1.msra.mxu0 0.0
        %582 = vmatprep.mubr.f32.mxu0 0.0
        %583 = vmatmul.mubr.f32.gmra.mrb[0].mxu0 %v517
        %v584 = vpop.f32.mrb[0].mxu0
        %v585 = vadd.f32 0.0, %v584
        %v586 = vpop.f32.mrb[0].mxu0
        %587 = vdwg.mxu0
        %v588 = vmul.f32 %v585, 0.00390625
        %v589 = vadd.f32 %v588, 1e-05
        %v590 = vrsqrt.pop %v589
        %v591 = vlaneseq
        %v592 = vshrl.u32 %v591, 7
        %v593 = vsub.s32 0, %v592
        %v594 = vrot.slane %v590, %v593
        %v595 = vmul.f32 %v510, %v594
        %v596 = vmax.f32 %v595, 0.0
        %s597 = scalar_lea.vmem [#allocation5], 384
        %v598 = vld [vmem:[%s597] sm:$0xff]
        %v599 = vld [vmem:[%s597 + $0x8] sm:$0xff]
        %v600 = vld [vmem:[%s597 + $0x10] sm:$0xff]
        %v601 = vld [vmem:[%s597 + $0x18] sm:$0xff]
        %v602 = vld [vmem:[%s597 + $0x20] sm:$0xff]
        %v603 = vld [vmem:[%s597 + $0x28] sm:$0xff]
        %v604 = vld [vmem:[%s597 + $0x30] sm:$0xff]
        %v605 = vld [vmem:[%s597 + $0x38] sm:$0xff]
        %v606 = vld [vmem:[%s597 + $0x40] sm:$0xff]
        %v607 = vld [vmem:[%s597 + $0x48] sm:$0xff]
        %v608 = vld [vmem:[%s597 + $0x50] sm:$0xff]
        %v609 = vld [vmem:[%s597 + $0x58] sm:$0xff]
        %v610 = vld [vmem:[%s597 + $0x60] sm:$0xff]
        %v611 = vld [vmem:[%s597 + $0x68] sm:$0xff]
        %v612 = vld [vmem:[%s597 + $0x70] sm:$0xff]
        %v613 = vld [vmem:[%s597 + $0x78] sm:$0xff]
        %v614 = vld [vmem:[%s597 + $0x80] sm:$0xff]
        %v615 = vld [vmem:[%s597 + $0x88] sm:$0xff]
        %v616 = vld [vmem:[%s597 + $0x90] sm:$0xff]
        %v617 = vld [vmem:[%s597 + $0x98] sm:$0xff]
        %v618 = vld [vmem:[%s597 + $0xa0] sm:$0xff]
        %v619 = vld [vmem:[%s597 + $0xa8] sm:$0xff]
        %v620 = vld [vmem:[%s597 + $0xb0] sm:$0xff]
        %v621 = vld [vmem:[%s597 + $0xb8] sm:$0xff]
        %v622 = vld [vmem:[%s597 + $0xc0] sm:$0xff]
        %v623 = vld [vmem:[%s597 + $0xc8] sm:$0xff]
        %v624 = vld [vmem:[%s597 + $0xd0] sm:$0xff]
        %v625 = vld [vmem:[%s597 + $0xd8] sm:$0xff]
        %v626 = vld [vmem:[%s597 + $0xe0] sm:$0xff]
        %v627 = vld [vmem:[%s597 + $0xe8] sm:$0xff]
        %v628 = vld [vmem:[%s597 + $0xf0] sm:$0xff]
        %v629 = vld [vmem:[%s597 + $0xf8] sm:$0xff]
        %v630 = vld [vmem:[%s597 + $0x100] sm:$0xff]
        %v631 = vld [vmem:[%s597 + $0x108] sm:$0xff]
        %v632 = vld [vmem:[%s597 + $0x110] sm:$0xff]
        %v633 = vld [vmem:[%s597 + $0x118] sm:$0xff]
        %v634 = vld [vmem:[%s597 + $0x120] sm:$0xff]
        %v635 = vld [vmem:[%s597 + $0x128] sm:$0xff]
        %v636 = vld [vmem:[%s597 + $0x130] sm:$0xff]
        %v637 = vld [vmem:[%s597 + $0x138] sm:$0xff]
        %v638 = vld [vmem:[%s597 + $0x140] sm:$0xff]
        %v639 = vld [vmem:[%s597 + $0x148] sm:$0xff]
        %v640 = vld [vmem:[%s597 + $0x150] sm:$0xff]
        %v641 = vld [vmem:[%s597 + $0x158] sm:$0xff]
        %v642 = vld [vmem:[%s597 + $0x160] sm:$0xff]
        %v643 = vld [vmem:[%s597 + $0x168] sm:$0xff]
        %v644 = vld [vmem:[%s597 + $0x170] sm:$0xff]
        %v645 = vld [vmem:[%s597 + $0x178] sm:$0xff]
        %v647 = vrot.slane %v596, 7
        %v649 = vsel %vm283, 0.0, %v647
        %v650 = vrot.slane %v596, 1
        %v652 = vsel %vm287, %v650, 0.0
        %653 = vmatprep.subr.mxu0 0.0
        %654 = vmatpush1.msra.mxu0 %v598
        %655 = vmatprep.subr.mxu0 0.0
        %656 = vmatpush1.msra.mxu0 %v599
        %657 = vmatprep.subr.mxu0 0.0
        %658 = vmatpush1.msra.mxu0 %v600
        %659 = vmatprep.subr.mxu0 0.0
        %660 = vmatpush1.msra.mxu0 %v601
        %661 = vmatprep.subr.mxu0 0.0
        %662 = vmatpush1.msra.mxu0 %v602
        %663 = vmatprep.subr.mxu0 0.0
        %664 = vmatpush1.msra.mxu0 %v603
        %665 = vmatprep.subr.mxu0 0.0
        %666 = vmatpush1.msra.mxu0 %v604
        %667 = vmatprep.subr.mxu0 0.0
        %668 = vmatpush1.msra.mxu0 %v605
        %669 = vmatprep.subr.mxu0 0.0
        %670 = vmatpush1.msra.mxu0 %v606
        %671 = vmatprep.subr.mxu0 0.0
        %672 = vmatpush1.msra.mxu0 %v607
        %673 = vmatprep.subr.mxu0 0.0
        %674 = vmatpush1.msra.mxu0 %v608
        %675 = vmatprep.subr.mxu0 0.0
        %676 = vmatpush1.msra.mxu0 %v609
        %677 = vmatprep.subr.mxu0 0.0
        %678 = vmatpush1.msra.mxu0 %v610
        %679 = vmatprep.subr.mxu0 0.0
        %680 = vmatpush1.msra.mxu0 %v611
        %681 = vmatprep.subr.mxu0 0.0
        %682 = vmatpush1.msra.mxu0 %v612
        %683 = vmatprep.subr.mxu0 0.0
        %684 = vmatpush1.msra.mxu0 %v613
        %685 = vmatprep.subr.mxu0 0.0
        %686 = vmatpush1.msra.mxu0 %v614
        %687 = vmatprep.subr.mxu0 0.0
        %688 = vmatpush1.msra.mxu0 %v615
        %689 = vmatprep.subr.mxu0 0.0
        %690 = vmatpush1.msra.mxu0 %v616
        %691 = vmatprep.subr.mxu0 0.0
        %692 = vmatpush1.msra.mxu0 %v617
        %693 = vmatprep.subr.mxu0 0.0
        %694 = vmatpush1.msra.mxu0 %v618
        %695 = vmatprep.subr.mxu0 0.0
        %696 = vmatpush1.msra.mxu0 %v619
        %697 = vmatprep.subr.mxu0 0.0
        %698 = vmatpush1.msra.mxu0 %v620
        %699 = vmatprep.subr.mxu0 0.0
        %700 = vmatpush1.msra.mxu0 %v621
        %701 = vmatprep.subr.mxu0 0.0
        %702 = vmatpush1.msra.mxu0 %v622
        %703 = vmatprep.subr.mxu0 0.0
        %704 = vmatpush1.msra.mxu0 %v623
        %705 = vmatprep.subr.mxu0 0.0
        %706 = vmatpush1.msra.mxu0 %v624
        %707 = vmatprep.subr.mxu0 0.0
        %708 = vmatpush1.msra.mxu0 %v625
        %709 = vmatprep.subr.mxu0 0.0
        %710 = vmatpush1.msra.mxu0 %v626
        %711 = vmatprep.subr.mxu0 0.0
        %712 = vmatpush1.msra.mxu0 %v627
        %713 = vmatprep.subr.mxu0 0.0
        %714 = vmatpush1.msra.mxu0 %v628
        %715 = vmatprep.subr.mxu0 0.0
        %716 = vmatpush1.msra.mxu0 %v629
        %717 = vmatprep.mubr.f32.mxu0 %v596
        %718 = vmatmul.mubr.f32.gmra.mrb[0].mxu0 %v649
        %v719 = vpop.f32.mrb[0].mxu0
        %v720 = vadd.f32 0.0, %v719
        %v721 = vpop.f32.mrb[0].mxu0
        %722 = vdwg.mxu0
        %723 = vmatprep.subr.mxu0 0.0
        %724 = vmatpush1.msra.mxu0 %v630
        %725 = vmatprep.subr.mxu0 0.0
        %726 = vmatpush1.msra.mxu0 %v631
        %727 = vmatprep.subr.mxu0 0.0
        %728 = vmatpush1.msra.mxu0 %v632
        %729 = vmatprep.subr.mxu0 0.0
        %730 = vmatpush1.msra.mxu0 %v633
        %731 = vmatprep.subr.mxu0 0.0
        %732 = vmatpush1.msra.mxu0 %v634
        %733 = vmatprep.subr.mxu0 0.0
        %734 = vmatpush1.msra.mxu0 %v635
        %735 = vmatprep.subr.mxu0 0.0
        %736 = vmatpush1.msra.mxu0 %v636
        %737 = vmatprep.subr.mxu0 0.0
        %738 = vmatpush1.msra.mxu0 %v637
        %739 = vmatprep.subr.mxu0 0.0
        %740 = vmatpush1.msra.mxu0 %v638
        %741 = vmatprep.subr.mxu0 0.0
        %742 = vmatpush1.msra.mxu0 %v639
        %743 = vmatprep.subr.mxu0 0.0
        %744 = vmatpush1.msra.mxu0 %v640
        %745 = vmatprep.subr.mxu0 0.0
        %746 = vmatpush1.msra.mxu0 %v641
        %747 = vmatprep.subr.mxu0 0.0
        %748 = vmatpush1.msra.mxu0 %v642
        %749 = vmatprep.subr.mxu0 0.0
        %750 = vmatpush1.msra.mxu0 %v643
        %751 = vmatprep.subr.mxu0 0.0
        %752 = vmatpush1.msra.mxu0 %v644
        %753 = vmatprep.subr.mxu0 0.0
        %754 = vmatpush1.msra.mxu0 %v645
        %755 = vmatprep.subr.mxu0 0.0
        %756 = vmatpush1.msra.mxu0 0.0
        %757 = vmatprep.subr.mxu0 0.0
        %758 = vmatpush1.msra.mxu0 0.0
        %759 = vmatprep.subr.mxu0 0.0
        %760 = vmatpush1.msra.mxu0 0.0
        %761 = vmatprep.subr.mxu0 0.0
        %762 = vmatpush1.msra.mxu0 0.0
        %763 = vmatprep.subr.mxu0 0.0
        %764 = vmatpush1.msra.mxu0 0.0
        %765 = vmatprep.subr.mxu0 0.0
        %766 = vmatpush1.msra.mxu0 0.0
        %767 = vmatprep.subr.mxu0 0.0
        %768 = vmatpush1.msra.mxu0 0.0
        %769 = vmatprep.subr.mxu0 0.0
        %770 = vmatpush1.msra.mxu0 0.0
        %771 = vmatprep.subr.mxu0 0.0
        %772 = vmatpush1.msra.mxu0 0.0
        %773 = vmatprep.subr.mxu0 0.0
        %774 = vmatpush1.msra.mxu0 0.0
        %775 = vmatprep.subr.mxu0 0.0
        %776 = vmatpush1.msra.mxu0 0.0
        %777 = vmatprep.subr.mxu0 0.0
        %778 = vmatpush1.msra.mxu0 0.0
        %779 = vmatprep.subr.mxu0 0.0
        %780 = vmatpush1.msra.mxu0 0.0
        %781 = vmatprep.subr.mxu0 0.0
        %782 = vmatpush1.msra.mxu0 0.0
        %783 = vmatprep.subr.mxu0 0.0
        %784 = vmatpush1.msra.mxu0 0.0
        %785 = vmatprep.subr.mxu0 0.0
        %786 = vmatpush1.msra.mxu0 0.0
        %787 = vmatprep.mubr.f32.mxu0 0.0
        %788 = vmatmul.mubr.f32.gmra.mrb[0].mxu0 %v652
        %v789 = vpop.f32.mrb[0].mxu0
        %v790 = vadd.f32 %v720, %v789
        %v791 = vpop.f32.mrb[0].mxu0
        %792 = vdwg.mxu0
        %v793 = vrot.slane %v790, 4
        %v794 = vadd.f32 %v790, %v793
        %v795 = vrot.slane %v794, 2
        %v796 = vadd.f32 %v794, %v795
        %v797 = vrot.slane %v796, 1
        %v798 = vadd.f32 %v796, %v797
        %799 = vmatprep.subr.mxu0 0.0
        %800 = vmatpush1.msra.mxu0 %v216
        %801 = vmatprep.subr.mxu0 0.0
        %802 = vmatpush1.msra.mxu0 %v217
        %803 = vmatprep.subr.mxu0 0.0
        %804 = vmatpush1.msra.mxu0 %v218
        %805 = vmatprep.subr.mxu0 0.0
        %806 = vmatpush1.msra.mxu0 %v219
        %807 = vmatprep.subr.mxu0 0.0
        %808 = vmatpush1.msra.mxu0 %v220
        %809 = vmatprep.subr.mxu0 0.0
        %810 = vmatpush1.msra.mxu0 %v221
        %811 = vmatprep.subr.mxu0 0.0
        %812 = vmatpush1.msra.mxu0 %v222
        %813 = vmatprep.subr.mxu0 0.0
        %814 = vmatpush1.msra.mxu0 %v223
        %815 = vmatprep.subr.mxu0 0.0
        %816 = vmatpush1.msra.mxu0 %v224
        %817 = vmatprep.subr.mxu0 0.0
        %818 = vmatpush1.msra.mxu0 %v225
        %819 = vmatprep.subr.mxu0 0.0
        %820 = vmatpush1.msra.mxu0 %v226
        %821 = vmatprep.subr.mxu0 0.0
        %822 = vmatpush1.msra.mxu0 %v227
        %823 = vmatprep.subr.mxu0 0.0
        %824 = vmatpush1.msra.mxu0 %v228
        %825 = vmatprep.subr.mxu0 0.0
        %826 = vmatpush1.msra.mxu0 %v229
        %827 = vmatprep.subr.mxu0 0.0
        %828 = vmatpush1.msra.mxu0 %v230
        %829 = vmatprep.subr.mxu0 0.0
        %830 = vmatpush1.msra.mxu0 %v231
        %831 = vmatprep.subr.mxu0 0.0
        %832 = vmatpush1.msra.mxu0 0.0
        %833 = vmatprep.subr.mxu0 0.0
        %834 = vmatpush1.msra.mxu0 0.0
        %835 = vmatprep.subr.mxu0 0.0
        %836 = vmatpush1.msra.mxu0 0.0
        %837 = vmatprep.subr.mxu0 0.0
        %838 = vmatpush1.msra.mxu0 0.0
        %839 = vmatprep.subr.mxu0 0.0
        %840 = vmatpush1.msra.mxu0 0.0
        %841 = vmatprep.subr.mxu0 0.0
        %842 = vmatpush1.msra.mxu0 0.0
        %843 = vmatprep.subr.mxu0 0.0
        %844 = vmatpush1.msra.mxu0 0.0
        %845 = vmatprep.subr.mxu0 0.0
        %846 = vmatpush1.msra.mxu0 0.0
        %847 = vmatprep.subr.mxu0 0.0
        %848 = vmatpush1.msra.mxu0 0.0
        %849 = vmatprep.subr.mxu0 0.0
        %850 = vmatpush1.msra.mxu0 0.0
        %851 = vmatprep.subr.mxu0 0.0
        %852 = vmatpush1.msra.mxu0 0.0
        %853 = vmatprep.subr.mxu0 0.0
        %854 = vmatpush1.msra.mxu0 0.0
        %855 = vmatprep.subr.mxu0 0.0
        %856 = vmatpush1.msra.mxu0 0.0
        %857 = vmatprep.subr.mxu0 0.0
        %858 = vmatpush1.msra.mxu0 0.0
        %859 = vmatprep.subr.mxu0 0.0
        %860 = vmatpush1.msra.mxu0 0.0
        %861 = vmatprep.subr.mxu0 0.0
        %862 = vmatpush1.msra.mxu0 0.0
        %863 = vmatprep.mubr.f32.mxu0 0.0
        %864 = vmatmul.mubr.f32.gmra.mrb[0].mxu0 %v798
        %v865 = vpop.f32.mrb[0].mxu0
        %v866 = vadd.f32 0.0, %v865
        %v867 = vpop.f32.mrb[0].mxu0
        %868 = vdwg.mxu0
        %v869 = vmul.f32 %v866, 0.00390625
        %v870 = vlaneseq
        %v871 = vshrl.u32 %v870, 7
        %v872 = vsub.s32 0, %v871
        %v873 = vrot.slane %v869, %v872
        %v874 = vsub.f32 %v790, %v873
        %v875 = vmul.f32 %v874, %v874
        %v876 = vrot.slane %v875, 4
        %v877 = vadd.f32 %v875, %v876
        %v878 = vrot.slane %v877, 2
        %v879 = vadd.f32 %v877, %v878
        %v880 = vrot.slane %v879, 1
        %v881 = vadd.f32 %v879, %v880
        %882 = vmatprep.subr.mxu0 0.0
        %883 = vmatpush1.msra.mxu0 %v216
        %884 = vmatprep.subr.mxu0 0.0
        %885 = vmatpush1.msra.mxu0 %v217
        %886 = vmatprep.subr.mxu0 0.0
        %887 = vmatpush1.msra.mxu0 %v218
        %888 = vmatprep.subr.mxu0 0.0
        %889 = vmatpush1.msra.mxu0 %v219
        %890 = vmatprep.subr.mxu0 0.0
        %891 = vmatpush1.msra.mxu0 %v220
        %892 = vmatprep.subr.mxu0 0.0
        %893 = vmatpush1.msra.mxu0 %v221
        %894 = vmatprep.subr.mxu0 0.0
        %895 = vmatpush1.msra.mxu0 %v222
        %896 = vmatprep.subr.mxu0 0.0
        %897 = vmatpush1.msra.mxu0 %v223
        %898 = vmatprep.subr.mxu0 0.0
        %899 = vmatpush1.msra.mxu0 %v224
        %900 = vmatprep.subr.mxu0 0.0
        %901 = vmatpush1.msra.mxu0 %v225
        %902 = vmatprep.subr.mxu0 0.0
        %903 = vmatpush1.msra.mxu0 %v226
        %904 = vmatprep.subr.mxu0 0.0
        %905 = vmatpush1.msra.mxu0 %v227
        %906 = vmatprep.subr.mxu0 0.0
        %907 = vmatpush1.msra.mxu0 %v228
        %908 = vmatprep.subr.mxu0 0.0
        %909 = vmatpush1.msra.mxu0 %v229
        %910 = vmatprep.subr.mxu0 0.0
        %911 = vmatpush1.msra.mxu0 %v230
        %912 = vmatprep.subr.mxu0 0.0
        %913 = vmatpush1.msra.mxu0 %v231
        %914 = vmatprep.subr.mxu0 0.0
        %915 = vmatpush1.msra.mxu0 0.0
        %916 = vmatprep.subr.mxu0 0.0
        %917 = vmatpush1.msra.mxu0 0.0
        %918 = vmatprep.subr.mxu0 0.0
        %919 = vmatpush1.msra.mxu0 0.0
        %920 = vmatprep.subr.mxu0 0.0
        %921 = vmatpush1.msra.mxu0 0.0
        %922 = vmatprep.subr.mxu0 0.0
        %923 = vmatpush1.msra.mxu0 0.0
        %924 = vmatprep.subr.mxu0 0.0
        %925 = vmatpush1.msra.mxu0 0.0
        %926 = vmatprep.subr.mxu0 0.0
        %927 = vmatpush1.msra.mxu0 0.0
        %928 = vmatprep.subr.mxu0 0.0
        %929 = vmatpush1.msra.mxu0 0.0
        %930 = vmatprep.subr.mxu0 0.0
        %931 = vmatpush1.msra.mxu0 0.0
        %932 = vmatprep.subr.mxu0 0.0
        %933 = vmatpush1.msra.mxu0 0.0
        %934 = vmatprep.subr.mxu0 0.0
        %935 = vmatpush1.msra.mxu0 0.0
        %936 = vmatprep.subr.mxu0 0.0
        %937 = vmatpush1.msra.mxu0 0.0
        %938 = vmatprep.subr.mxu0 0.0
        %939 = vmatpush1.msra.mxu0 0.0
        %940 = vmatprep.subr.mxu0 0.0
        %941 = vmatpush1.msra.mxu0 0.0
        %942 = vmatprep.subr.mxu0 0.0
        %943 = vmatpush1.msra.mxu0 0.0
        %944 = vmatprep.subr.mxu0 0.0
        %945 = vmatpush1.msra.mxu0 0.0
        %946 = vmatprep.mubr.f32.mxu0 0.0
        %947 = vmatmul.mubr.f32.gmra.mrb[0].mxu0 %v881
        %v948 = vpop.f32.mrb[0].mxu0
        %v949 = vadd.f32 0.0, %v948
        %v950 = vpop.f32.mrb[0].mxu0
        %951 = vdwg.mxu0
        %v952 = vmul.f32 %v949, 0.00390625
        %v953 = vadd.f32 %v952, 1e-05
        %v954 = vrsqrt.pop %v953
        %v955 = vlaneseq
        %v956 = vshrl.u32 %v955, 7
        %v957 = vsub.s32 0, %v956
        %v958 = vrot.slane %v954, %v957
        %v959 = vmul.f32 %v874, %v958
        %v960 = vadd.f32 %v959, %v215
        %961 = vst [vmem:[%s214] sm:$0xff] %v960
        %s962 = sand.u32 %s97, 1
        %s963 = scalar_lea.sflag [#allocation4], %s962
        %s964 = sand.u32 %s97, 1
        %s965 = smul.addr %s964, 8
        %s966 = scalar_lea.vmem [#allocation8], %s965
        // Predicated region
        $region45: #{tpu_custom_call.1} parent=31 // pred_check
          %p967 = pneg %p107
        $region46: #{tpu_custom_call.1} parent=31 // pred_check_branch
          %969 = sbr.rel (%p967) target = $region48
        $region47: #{tpu_custom_call.1} parent=31 // pred_region
          %s971 = ssub.s32 128, 128
          %972 = vsyncadd %s963, %s971
          %s973 = smul.addr %s21, 128
          %s974 = scalar_lea.hbm %s3, %s973
          %s976 = sshll.u32 %s966, 4
          %s977 = int_to_ptr.vmem [resolvable:$true] %s976
          %979 = dma.vmem_to_hbm [thread:$0]  %s977, 128, %s974, %s963
        $region48: #{tpu_custom_call.1} parent=31 // pred_fallthru
          _
      $region32: #{tpu_custom_call.1} parent=5 // pred_fallthru
        _
      %p980 = scmp.le.s32.totalorder 2, %s16
      // Predicated region
      $region49: #{tpu_custom_call.1} parent=5 // pred_check
        %p981 = pneg %p980
      $region50: #{tpu_custom_call.1} parent=5 // pred_check_branch
        %983 = sbr.rel (%p981) target = $region52
      $region51: #{tpu_custom_call.1} parent=5 // pred_region
        %s984 = ssub.s32 %s16, 2
        // Predicated region
        $region53: #{tpu_custom_call.1} parent=51 // pred_check
          %p985 = pneg %p113
        $region54: #{tpu_custom_call.1} parent=51 // pred_check_branch
          %987 = sbr.rel (%p985) target = $region56
        $region55: #{tpu_custom_call.1} parent=51 // pred_region
          %s988 = sand.u32 %s98, 1
          %s989 = scalar_lea.sflag [#allocation4], %s988
          %s990 = sand.u32 %s98, 1
          %s991 = smul.addr %s990, 8
          %s992 = scalar_lea.vmem [#allocation8], %s991
          %993 = dma.done %s989, 128
        $region56: #{tpu_custom_call.1} parent=51 // pred_fallthru
          _
      $region52: #{tpu_custom_call.1} parent=5 // pred_fallthru
        _
    $region6: #{tpu_custom_call.1} parent=1 // loop_footer
      %s20 = sadd.s32 1, %s16
    $region7: #{tpu_custom_call.1} parent=1 // loop_footer_branch
      %15 = sbr.rel target = $region3
    $region8: #{tpu_custom_call.1} parent=1 // loop_exit
      _
    %994 = vsyncpa [#allocation3], 1
    %s995 = scalar_lea.sflag [#allocation3], 1
    %996 = vsyncpa %s995, 1
    %997 = vsyncpa [#allocation6], 1
    %998 = vsyncpa [#allocation4], 1
    %s999 = scalar_lea.sflag [#allocation4], 1
    %1000 = vsyncpa %s999, 1

</llo_original>
